<compile_context>
chip_gen: v6e
topology: v6e:2x2x1
jax: 0.10.0
libtpu: 0.0.40
codegen_flags: <defaults>
</compile_context>

<pallas_src>
import functools

import jax
import jax.numpy as jnp
from jax.experimental import pallas as pl
from jax.experimental.pallas import tpu as pltpu

LAMBD = 0.005
SCALE_LOSS = 0.025


# --------------------------------------------------------------------------
# Pass 1: per-feature mean and 1/(sqrt(N)*std)  (streaming reduce over N).
# --------------------------------------------------------------------------
def _stats_kernel(z1_ref, z2_ref, m1_ref, sc1_ref, m2_ref, sc2_ref,
                  s1_acc, q1_acc, s2_acc, q2_acc, *, n, rows_per_step):
    k = pl.program_id(1)

    @pl.when(k == 0)
    def _():
        s1_acc[...] = jnp.zeros_like(s1_acc)
        q1_acc[...] = jnp.zeros_like(q1_acc)
        s2_acc[...] = jnp.zeros_like(s2_acc)
        q2_acc[...] = jnp.zeros_like(q2_acc)

    def accumulate(z_ref, s_acc, q_acc):
        z = z_ref[...].astype(jnp.float32)
        if rows_per_step % 8 == 0:
            # Keep the accumulator 8 sublanes wide: pure VPU adds in the hot
            # loop (no per-step cross-sublane XLU reduce).
            zr = z.reshape(rows_per_step // 8, 8, z.shape[-1])
            s_acc[...] += jnp.sum(zr, axis=0)
            q_acc[...] += jnp.sum(zr * zr, axis=0)
        else:
            s_acc[0:1, :] += jnp.sum(z, axis=0, keepdims=True)
            q_acc[0:1, :] += jnp.sum(z * z, axis=0, keepdims=True)

    accumulate(z1_ref, s1_acc, q1_acc)
    accumulate(z2_ref, s2_acc, q2_acc)

    @pl.when(k == pl.num_programs(1) - 1)
    def _():
        inv_n = jnp.float32(1.0 / n)
        inv_nm1 = jnp.float32(1.0 / (n - 1))

        def finish(s_acc, q_acc, m_ref, sc_ref):
            s = jnp.sum(s_acc[...], axis=0, keepdims=True)
            q = jnp.sum(q_acc[...], axis=0, keepdims=True)
            m = s * inv_n
            # Unbiased variance; clamp tiny negatives from cancellation.
            # TODO(synk): one-pass variance can cancel catastrophically when
            # |mean| >> std; a shifted/two-pass variance would be more robust.
            var = jnp.maximum((q - s * m) * inv_nm1, jnp.float32(0.0))
            m_ref[...] = m
            sc_ref[...] = jax.lax.rsqrt(var * jnp.float32(n))  # 1/(sqrt(N)*std)

        finish(s1_acc, q1_acc, m1_ref, sc1_ref)
        finish(s2_acc, q2_acc, m2_ref, sc2_ref)


# --------------------------------------------------------------------------
# Pass 2: normalize + cast to the streaming dtype (elementwise, tiled).
# --------------------------------------------------------------------------
def _normalize_kernel(z1_ref, z2_ref, m1_ref, sc1_ref, m2_ref, sc2_ref,
                      o1_ref, o2_ref):
    o1_ref[...] = ((z1_ref[...].astype(jnp.float32) - m1_ref[...])
                   * sc1_ref[...]).astype(o1_ref.dtype)
    o2_ref[...] = ((z2_ref[...].astype(jnp.float32) - m2_ref[...])
                   * sc2_ref[...]).astype(o2_ref.dtype)


# --------------------------------------------------------------------------
# Pass 3: tiled Gram accumulation (MXU) + loss epilogue.
# --------------------------------------------------------------------------
def _gram_loss_kernel(z1n_ref, z2n_ref, partial_ref, acc_ref, *,
                      lambd, scale_loss):
    i = pl.program_id(0)
    j = pl.program_id(1)
    k = pl.program_id(2)

    @pl.when(k == 0)
    def _():
        acc_ref[...] = jnp.zeros_like(acc_ref)

    # Contract over the batch (sublane) axis of both tiles; no in-kernel
    # transpose, bf16 operands feed the MXU directly, f32 accumulation.
    acc_ref[...] += jax.lax.dot_general(
        z1n_ref[...], z2n_ref[...],
        dimension_numbers=(((0,), (0,)), ((), ())),
        preferred_element_type=jnp.float32,
    )

    @pl.when(k == pl.num_programs(2) - 1)
    def _():
        corr = acc_ref[...]                       # already includes 1/N
        base = jnp.float32(lambd) * jnp.sum(corr * corr)

        @pl.when(i != j)
        def _():
            partial_ref[...] = jnp.full(partial_ref.shape,
                                        jnp.float32(scale_loss) * base,
                                        dtype=jnp.float32)

        # Diagonal correction only on diagonal blocks:
        #   sum_d [(corr_dd-1)^2 - lambd*corr_dd^2]
        #     = (1-lambd)*sum_d corr_dd^2 - 2*sum_d corr_dd + tD
        @pl.when(i == j)
        def _():
            row = jax.lax.broadcasted_iota(jnp.int32, corr.shape, 0)
            col = jax.lax.broadcasted_iota(jnp.int32, corr.shape, 1)
            diag = jnp.where(row == col, corr, jnp.float32(0.0))
            extra = (jnp.float32(1.0 - lambd) * jnp.sum(diag * diag)
                     - jnp.float32(2.0) * jnp.sum(diag)
                     + jnp.float32(corr.shape[0]))
            partial_ref[...] = jnp.full(
                partial_ref.shape,
                jnp.float32(scale_loss) * (base + extra),
                dtype=jnp.float32)


# --------------------------------------------------------------------------
# Tile planning helpers.
# --------------------------------------------------------------------------
def _largest_divisor(dim, candidates):
    for c in candidates:
        if dim % c == 0:
            return c
    return None


def _pick_block_d(d, max_block=2048):
    b = _largest_divisor(d, [c for c in (2048, 1024, 512, 256, 128)
                             if c <= max_block])
    if b is not None:
        return b
    if d % 128 == 0:
        best = 128
        for cand in range(256, min(d, max_block) + 1, 128):
            if d % cand == 0:
                best = cand
        return best
    if d <= max_block:
        return d          # small / irregular D: single full-width tile
    raise ValueError(
        f"feature dim {d} is not tileable on the lane axis; pad D to a "
        "multiple of 128")


# --------------------------------------------------------------------------
# Wrapper.
# --------------------------------------------------------------------------
def barlow_twins_loss(z1, z2, *, lambd=LAMBD, scale_loss=SCALE_LOSS,
                      stream_dtype=jnp.bfloat16, block_d=None, block_n=None):
    """Pallas TPU implementation of BarlowTwinsLoss.forward({'z': (z1, z2)}).

    stream_dtype=jnp.bfloat16 (default) streams pre-normalized bf16 tiles to
    the MXU (fast path on all generations, ~1e-3 relative accuracy on the
    loss); stream_dtype=jnp.float32 keeps the faithful f32 path.
    """
    assert z1.shape == z2.shape and z1.ndim == 2
    n, d = z1.shape
    assert n >= 2, "unbiased std (ddof=1) needs at least 2 samples"

    stream_bytes = jnp.dtype(stream_dtype).itemsize

    # ---- plan pass-3 tiles against a VMEM budget (safe for v7x 64 MiB) ----
    if block_d is None:
        block_d = _pick_block_d(d)
        # v7x megacore: keep >= 2 output tiles so both TensorCores get work.
        if d // block_d == 1 and block_d % 256 == 0:
            block_d //= 2
    assert d % block_d == 0, "block_d must divide D"

    bn_cands = [c for c in (512, 256, 128, 64, 32, 16, 8) if n % c == 0]
    if block_n is None:
        block_n = bn_cands[0] if bn_cands else n
    assert n % block_n == 0, "block_n must divide N"

    def _pass3_vmem(bd, bn):
        return (bd * bd * 4                      # f32 accumulator
                + 2 * 2 * bn * bd * stream_bytes  # 2 inputs, double-buffered
                + 2 * 8 * 128 * 4)                # partial output block

    budget = 40 * 1024 * 1024
    while _pass3_vmem(block_d, block_n) > budget:
        smaller_bn = [c for c in bn_cands if c < block_n]
        if smaller_bn:
            block_n = smaller_bn[0]
            continue
        if block_d % 2 == 0 and (block_d // 2) % 128 == 0:
            block_d //= 2
            continue
        break
    nd = d // block_d
    vmem_limit = int(min(56 * 2**20,
                         max(32 * 2**20, _pass3_vmem(block_d, block_n)
                             + 8 * 2**20)))

    # ---- pass 1/2 tiles (small; fit v5e's 16 MiB scoped default) ----
    block_d_s = _largest_divisor(d, (512, 256, 128)) or d
    block_n_s = _largest_divisor(n, (512, 256, 128, 64, 32, 16, 8)) or n

    # ---- pass 1: per-feature mean and 1/(sqrt(N)*std) ----
    stats_kernel = functools.partial(_stats_kernel, n=n,
                                     rows_per_step=block_n_s)
    vec_shape = jax.ShapeDtypeStruct((1, d), jnp.float32)
    m1, sc1, m2, sc2 = pl.pallas_call(
        stats_kernel,
        grid=(d // block_d_s, n // block_n_s),
        in_specs=[
            pl.BlockSpec((block_n_s, block_d_s), lambda di, k: (k, di)),
            pl.BlockSpec((block_n_s, block_d_s), lambda di, k: (k, di)),
        ],
        out_specs=[pl.BlockSpec((1, block_d_s), lambda di, k: (0, di))] * 4,
        out_shape=[vec_shape] * 4,
        scratch_shapes=[pltpu.VMEM((8, block_d_s), jnp.float32)] * 4,
        compiler_params=pltpu.CompilerParams(
            dimension_semantics=("parallel", "arbitrary")),
    )(z1, z2)

    # ---- pass 2: write centered & scaled tiles in the streaming dtype ----
    norm_shape = jax.ShapeDtypeStruct((n, d), stream_dtype)
    z1n, z2n = pl.pallas_call(
        _normalize_kernel,
        grid=(n // block_n_s, d // block_d_s),
        in_specs=[
            pl.BlockSpec((block_n_s, block_d_s), lambda i, j: (i, j)),
            pl.BlockSpec((block_n_s, block_d_s), lambda i, j: (i, j)),
            pl.BlockSpec((1, block_d_s), lambda i, j: (0, j)),
            pl.BlockSpec((1, block_d_s), lambda i, j: (0, j)),
            pl.BlockSpec((1, block_d_s), lambda i, j: (0, j)),
            pl.BlockSpec((1, block_d_s), lambda i, j: (0, j)),
        ],
        out_specs=[
            pl.BlockSpec((block_n_s, block_d_s), lambda i, j: (i, j)),
            pl.BlockSpec((block_n_s, block_d_s), lambda i, j: (i, j)),
        ],
        out_shape=[norm_shape, norm_shape],
        compiler_params=pltpu.CompilerParams(
            dimension_semantics=("parallel", "parallel")),
    )(z1, z2, m1, sc1, m2, sc2)

    # ---- pass 3: tiled Gram + loss ----
    gram_kernel = functools.partial(_gram_loss_kernel, lambd=float(lambd),
                                    scale_loss=float(scale_loss))
    partials = pl.pallas_call(
        gram_kernel,
        grid=(nd, nd, n // block_n),
        in_specs=[
            pl.BlockSpec((block_n, block_d), lambda i, j, k: (k, i)),  # z1n
            pl.BlockSpec((block_n, block_d), lambda i, j, k: (k, j)),  # z2n
        ],
        out_specs=pl.BlockSpec((8, 128), lambda i, j, k: (i, j)),
        out_shape=jax.ShapeDtypeStruct((nd * 8, nd * 128), jnp.float32),
        scratch_shapes=[pltpu.VMEM((block_d, block_d), jnp.float32)],
        compiler_params=pltpu.CompilerParams(
            dimension_semantics=("parallel", "parallel", "arbitrary"),
            vmem_limit_bytes=vmem_limit),
    )(z1n, z2n)

    # Each (8,128) block holds one tile's replicated partial loss; sum them.
    return jnp.sum(partials[::8, ::128])


# --------------------------------------------------------------------------
# Pure-JAX reference mirroring the PyTorch module (for validation only).
# --------------------------------------------------------------------------
def _reference(z1, z2, lambd=LAMBD, scale_loss=SCALE_LOSS):
    n, d = z1.shape
    z1n = (z1 - z1.mean(0)) / jnp.std(z1, axis=0, ddof=1)
    z2n = (z2 - z2.mean(0)) / jnp.std(z2, axis=0, ddof=1)
    corr = jnp.einsum("bi,bj->ij", z1n, z2n) / n
    eye = jnp.eye(d, dtype=corr.dtype)
    cdif = (corr - eye) ** 2
    cdif = jnp.where(eye.astype(bool), cdif, cdif * lambd)
    return scale_loss * cdif.sum()


if __name__ == "__main__":
    # Small case (single tile on every axis), default bf16 streaming path.
    k1, k2 = jax.random.split(jax.random.PRNGKey(0))
    N1, D1 = 8, 32
    z1a = jax.random.normal(k1, (N1, D1), dtype=jnp.float32)
    z2a = jax.random.normal(k2, (N1, D1), dtype=jnp.float32)
    loss_a = barlow_twins_loss(z1a, z2a)
    jax.block_until_ready(loss_a)
    ref_a = _reference(z1a, z2a)
    assert jnp.allclose(loss_a, ref_a, rtol=2e-2, atol=1e-3), (loss_a, ref_a)

    # Larger case exercising the (i, j, k) grid, accumulators and the
    # nonzero-mean / non-unit-std normalization path (bf16 default).
    k3, k4 = jax.random.split(jax.random.PRNGKey(1))
    N2, D2 = 256, 384
    z1b = jax.random.normal(k3, (N2, D2), dtype=jnp.float32) * 1.5 + 0.3
    z2b = jax.random.normal(k4, (N2, D2), dtype=jnp.float32) * 0.7 - 0.1
    loss_b = barlow_twins_loss(z1b, z2b)
    jax.block_until_ready(loss_b)
    ref_b = _reference(z1b, z2b)
    assert jnp.allclose(loss_b, ref_b, rtol=2e-2, atol=1e-3), (loss_b, ref_b)

    # Faithful f32 streaming path with explicit small tiles, tight tolerance.
    loss_c = barlow_twins_loss(z1b, z2b, stream_dtype=jnp.float32,
                               block_d=128, block_n=64)
    jax.block_until_ready(loss_c)
    assert jnp.allclose(loss_c, ref_b, rtol=2e-4, atol=1e-5), (loss_c, ref_b)

    print("KERNEL_OK")
</pallas_src>

<mosaic_0001>
module attributes {stable_mosaic.version = 11 : i64} {
  func.func @_stats_kernel(%arg0: i32, %arg1: i32, %arg2: memref<8x32xf32, #tpu.memory_space<vmem>>, %arg3: memref<8x32xf32, #tpu.memory_space<vmem>>, %arg4: memref<1x32xf32, #tpu.memory_space<vmem>>, %arg5: memref<1x32xf32, #tpu.memory_space<vmem>>, %arg6: memref<1x32xf32, #tpu.memory_space<vmem>>, %arg7: memref<1x32xf32, #tpu.memory_space<vmem>>, %arg8: memref<8x32xf32, #tpu.memory_space<vmem>>, %arg9: memref<8x32xf32, #tpu.memory_space<vmem>>, %arg10: memref<8x32xf32, #tpu.memory_space<vmem>>, %arg11: memref<8x32xf32, #tpu.memory_space<vmem>>) attributes {dimension_semantics = [#tpu.dimension_semantics<parallel>, #tpu.dimension_semantics<arbitrary>], iteration_bounds = array<i64: 1, 1>, scalar_prefetch = 0 : i64, scratch_operands = 4 : i64, tpu.core_type = #tpu.core_type<tc>, window_params = [{transform_indices = @transform_0, window_bounds = array<i64: 8, 32>}, {transform_indices = @transform_1, window_bounds = array<i64: 8, 32>}, {transform_indices = @transform_2, window_bounds = array<i64: 1, 32>}, {transform_indices = @transform_3, window_bounds = array<i64: 1, 32>}, {transform_indices = @transform_4, window_bounds = array<i64: 1, 32>}, {transform_indices = @transform_5, window_bounds = array<i64: 1, 32>}]} {
    %c0_i32 = arith.constant 0 : i32
    %0 = arith.cmpi eq, %arg1, %c0_i32 : i32
    %1 = arith.extui %0 : i1 to i32
    %c0_i32_0 = arith.constant 0 : i32
    %2 = arith.cmpi ne, %1, %c0_i32_0 : i32
    scf.if %2 {
      %cst_25 = arith.constant 0.000000e+00 : f32
      %28 = vector.broadcast %cst_25 : f32 to vector<8x32xf32>
      %c0_26 = arith.constant 0 : index
      %c0_27 = arith.constant 0 : index
      %29 = vector.load %arg8[%c0_26, %c0_27] : memref<8x32xf32, #tpu.memory_space<vmem>>, vector<8x32xf32>
      tpu.vector_store %arg8[%c0_26, %c0_27], %28 {strides = array<i32>} : memref<8x32xf32, #tpu.memory_space<vmem>>, vector<8x32xf32>,
      %cst_28 = arith.constant 0.000000e+00 : f32
      %30 = vector.broadcast %cst_28 : f32 to vector<8x32xf32>
      %c0_29 = arith.constant 0 : index
      %c0_30 = arith.constant 0 : index
      %31 = vector.load %arg9[%c0_29, %c0_30] : memref<8x32xf32, #tpu.memory_space<vmem>>, vector<8x32xf32>
      tpu.vector_store %arg9[%c0_29, %c0_30], %30 {strides = array<i32>} : memref<8x32xf32, #tpu.memory_space<vmem>>, vector<8x32xf32>,
      %cst_31 = arith.constant 0.000000e+00 : f32
      %32 = vector.broadcast %cst_31 : f32 to vector<8x32xf32>
      %c0_32 = arith.constant 0 : index
      %c0_33 = arith.constant 0 : index
      %33 = vector.load %arg10[%c0_32, %c0_33] : memref<8x32xf32, #tpu.memory_space<vmem>>, vector<8x32xf32>
      tpu.vector_store %arg10[%c0_32, %c0_33], %32 {strides = array<i32>} : memref<8x32xf32, #tpu.memory_space<vmem>>, vector<8x32xf32>,
      %cst_34 = arith.constant 0.000000e+00 : f32
      %34 = vector.broadcast %cst_34 : f32 to vector<8x32xf32>
      %c0_35 = arith.constant 0 : index
      %c0_36 = arith.constant 0 : index
      %35 = vector.load %arg11[%c0_35, %c0_36] : memref<8x32xf32, #tpu.memory_space<vmem>>, vector<8x32xf32>
      tpu.vector_store %arg11[%c0_35, %c0_36], %34 {strides = array<i32>} : memref<8x32xf32, #tpu.memory_space<vmem>>, vector<8x32xf32>,
    } else {
    }
    %c0 = arith.constant 0 : index
    %c0_1 = arith.constant 0 : index
    %3 = vector.load %arg2[%c0, %c0_1] : memref<8x32xf32, #tpu.memory_space<vmem>>, vector<8x32xf32>
    %4 = vector.shape_cast %3 : vector<8x32xf32> to vector<1x8x32xf32>
    %c0_2 = arith.constant 0 : index
    %c0_3 = arith.constant 0 : index
    %5 = vector.load %arg8[%c0_2, %c0_3] : memref<8x32xf32, #tpu.memory_space<vmem>>, vector<8x32xf32>
    %cst = arith.constant dense<0.000000e+00> : vector<8x32xf32>
    %6 = vector.multi_reduction <add>, %4, %cst [0] : vector<1x8x32xf32> to vector<8x32xf32>
    %7 = arith.addf %5, %6 : vector<8x32xf32>
    %c0_4 = arith.constant 0 : index
    %c0_5 = arith.constant 0 : index
    %8 = vector.load %arg8[%c0_4, %c0_5] : memref<8x32xf32, #tpu.memory_space<vmem>>, vector<8x32xf32>
    tpu.vector_store %arg8[%c0_4, %c0_5], %7 {strides = array<i32>} : memref<8x32xf32, #tpu.memory_space<vmem>>, vector<8x32xf32>,
    %c0_6 = arith.constant 0 : index
    %c0_7 = arith.constant 0 : index
    %9 = vector.load %arg9[%c0_6, %c0_7] : memref<8x32xf32, #tpu.memory_space<vmem>>, vector<8x32xf32>
    %10 = arith.mulf %4, %4 : vector<1x8x32xf32>
    %cst_8 = arith.constant dense<0.000000e+00> : vector<8x32xf32>
    %11 = vector.multi_reduction <add>, %10, %cst_8 [0] : vector<1x8x32xf32> to vector<8x32xf32>
    %12 = arith.addf %9, %11 : vector<8x32xf32>
    %c0_9 = arith.constant 0 : index
    %c0_10 = arith.constant 0 : index
    %13 = vector.load %arg9[%c0_9, %c0_10] : memref<8x32xf32, #tpu.memory_space<vmem>>, vector<8x32xf32>
    tpu.vector_store %arg9[%c0_9, %c0_10], %12 {strides = array<i32>} : memref<8x32xf32, #tpu.memory_space<vmem>>, vector<8x32xf32>,
    %c0_11 = arith.constant 0 : index
    %c0_12 = arith.constant 0 : index
    %14 = vector.load %arg3[%c0_11, %c0_12] : memref<8x32xf32, #tpu.memory_space<vmem>>, vector<8x32xf32>
    %15 = vector.shape_cast %14 : vector<8x32xf32> to vector<1x8x32xf32>
    %c0_13 = arith.constant 0 : index
    %c0_14 = arith.constant 0 : index
    %16 = vector.load %arg10[%c0_13, %c0_14] : memref<8x32xf32, #tpu.memory_space<vmem>>, vector<8x32xf32>
    %cst_15 = arith.constant dense<0.000000e+00> : vector<8x32xf32>
    %17 = vector.multi_reduction <add>, %15, %cst_15 [0] : vector<1x8x32xf32> to vector<8x32xf32>
    %18 = arith.addf %16, %17 : vector<8x32xf32>
    %c0_16 = arith.constant 0 : index
    %c0_17 = arith.constant 0 : index
    %19 = vector.load %arg10[%c0_16, %c0_17] : memref<8x32xf32, #tpu.memory_space<vmem>>, vector<8x32xf32>
    tpu.vector_store %arg10[%c0_16, %c0_17], %18 {strides = array<i32>} : memref<8x32xf32, #tpu.memory_space<vmem>>, vector<8x32xf32>,
    %c0_18 = arith.constant 0 : index
    %c0_19 = arith.constant 0 : index
    %20 = vector.load %arg11[%c0_18, %c0_19] : memref<8x32xf32, #tpu.memory_space<vmem>>, vector<8x32xf32>
    %21 = arith.mulf %15, %15 : vector<1x8x32xf32>
    %cst_20 = arith.constant dense<0.000000e+00> : vector<8x32xf32>
    %22 = vector.multi_reduction <add>, %21, %cst_20 [0] : vector<1x8x32xf32> to vector<8x32xf32>
    %23 = arith.addf %20, %22 : vector<8x32xf32>
    %c0_21 = arith.constant 0 : index
    %c0_22 = arith.constant 0 : index
    %24 = vector.load %arg11[%c0_21, %c0_22] : memref<8x32xf32, #tpu.memory_space<vmem>>, vector<8x32xf32>
    tpu.vector_store %arg11[%c0_21, %c0_22], %23 {strides = array<i32>} : memref<8x32xf32, #tpu.memory_space<vmem>>, vector<8x32xf32>,
    %c0_i32_23 = arith.constant 0 : i32
    %25 = arith.cmpi eq, %arg1, %c0_i32_23 : i32
    %26 = arith.extui %25 : i1 to i32
    %c0_i32_24 = arith.constant 0 : i32
    %27 = arith.cmpi ne, %26, %c0_i32_24 : i32
    scf.if %27 {
      %c0_25 = arith.constant 0 : index
      %c0_26 = arith.constant 0 : index
      %28 = vector.load %arg8[%c0_25, %c0_26] : memref<8x32xf32, #tpu.memory_space<vmem>>, vector<8x32xf32>
      %cst_27 = arith.constant dense<0.000000e+00> : vector<32xf32>
      %29 = vector.multi_reduction <add>, %28, %cst_27 [0] : vector<8x32xf32> to vector<32xf32>
      %30 = vector.shape_cast %29 : vector<32xf32> to vector<1x32xf32>
      %c0_28 = arith.constant 0 : index
      %c0_29 = arith.constant 0 : index
      %31 = vector.load %arg9[%c0_28, %c0_29] : memref<8x32xf32, #tpu.memory_space<vmem>>, vector<8x32xf32>
      %cst_30 = arith.constant dense<0.000000e+00> : vector<32xf32>
      %32 = vector.multi_reduction <add>, %31, %cst_30 [0] : vector<8x32xf32> to vector<32xf32>
      %33 = vector.shape_cast %32 : vector<32xf32> to vector<1x32xf32>
      %cst_31 = arith.constant 1.250000e-01 : f32
      %34 = vector.broadcast %cst_31 : f32 to vector<1x32xf32>
      %35 = arith.mulf %30, %34 : vector<1x32xf32>
      %36 = arith.mulf %30, %35 : vector<1x32xf32>
      %37 = arith.subf %33, %36 : vector<1x32xf32>
      %cst_32 = arith.constant 0.142857149 : f32
      %38 = vector.broadcast %cst_32 : f32 to vector<1x32xf32>
      %39 = arith.mulf %37, %38 : vector<1x32xf32>
      %cst_33 = arith.constant 0.000000e+00 : f32
      %40 = vector.broadcast %cst_33 : f32 to vector<1x32xf32>
      %41 = arith.maximumf %39, %40 : vector<1x32xf32>
      %c0_34 = arith.constant 0 : index
      %c0_35 = arith.constant 0 : index
      %42 = vector.load %arg4[%c0_34, %c0_35] : memref<1x32xf32, #tpu.memory_space<vmem>>, vector<1x32xf32>
      tpu.vector_store %arg4[%c0_34, %c0_35], %35 {strides = array<i32>} : memref<1x32xf32, #tpu.memory_space<vmem>>, vector<1x32xf32>,
      %cst_36 = arith.constant 8.000000e+00 : f32
      %43 = vector.broadcast %cst_36 : f32 to vector<1x32xf32>
      %44 = arith.mulf %41, %43 : vector<1x32xf32>
      %45 = math.rsqrt %44 : vector<1x32xf32>
      %c0_37 = arith.constant 0 : index
      %c0_38 = arith.constant 0 : index
      %46 = vector.load %arg5[%c0_37, %c0_38] : memref<1x32xf32, #tpu.memory_space<vmem>>, vector<1x32xf32>
      tpu.vector_store %arg5[%c0_37, %c0_38], %45 {strides = array<i32>} : memref<1x32xf32, #tpu.memory_space<vmem>>, vector<1x32xf32>,
      %c0_39 = arith.constant 0 : index
      %c0_40 = arith.constant 0 : index
      %47 = vector.load %arg10[%c0_39, %c0_40] : memref<8x32xf32, #tpu.memory_space<vmem>>, vector<8x32xf32>
      %cst_41 = arith.constant dense<0.000000e+00> : vector<32xf32>
      %48 = vector.multi_reduction <add>, %47, %cst_41 [0] : vector<8x32xf32> to vector<32xf32>
      %49 = vector.shape_cast %48 : vector<32xf32> to vector<1x32xf32>
      %c0_42 = arith.constant 0 : index
      %c0_43 = arith.constant 0 : index
      %50 = vector.load %arg11[%c0_42, %c0_43] : memref<8x32xf32, #tpu.memory_space<vmem>>, vector<8x32xf32>
      %cst_44 = arith.constant dense<0.000000e+00> : vector<32xf32>
      %51 = vector.multi_reduction <add>, %50, %cst_44 [0] : vector<8x32xf32> to vector<32xf32>
      %52 = vector.shape_cast %51 : vector<32xf32> to vector<1x32xf32>
      %cst_45 = arith.constant 1.250000e-01 : f32
      %53 = vector.broadcast %cst_45 : f32 to vector<1x32xf32>
      %54 = arith.mulf %49, %53 : vector<1x32xf32>
      %55 = arith.mulf %49, %54 : vector<1x32xf32>
      %56 = arith.subf %52, %55 : vector<1x32xf32>
      %cst_46 = arith.constant 0.142857149 : f32
      %57 = vector.broadcast %cst_46 : f32 to vector<1x32xf32>
      %58 = arith.mulf %56, %57 : vector<1x32xf32>
      %cst_47 = arith.constant 0.000000e+00 : f32
      %59 = vector.broadcast %cst_47 : f32 to vector<1x32xf32>
      %60 = arith.maximumf %58, %59 : vector<1x32xf32>
      %c0_48 = arith.constant 0 : index
      %c0_49 = arith.constant 0 : index
      %61 = vector.load %arg6[%c0_48, %c0_49] : memref<1x32xf32, #tpu.memory_space<vmem>>, vector<1x32xf32>
      tpu.vector_store %arg6[%c0_48, %c0_49], %54 {strides = array<i32>} : memref<1x32xf32, #tpu.memory_space<vmem>>, vector<1x32xf32>,
      %cst_50 = arith.constant 8.000000e+00 : f32
      %62 = vector.broadcast %cst_50 : f32 to vector<1x32xf32>
      %63 = arith.mulf %60, %62 : vector<1x32xf32>
      %64 = math.rsqrt %63 : vector<1x32xf32>
      %c0_51 = arith.constant 0 : index
      %c0_52 = arith.constant 0 : index
      %65 = vector.load %arg7[%c0_51, %c0_52] : memref<1x32xf32, #tpu.memory_space<vmem>>, vector<1x32xf32>
      tpu.vector_store %arg7[%c0_51, %c0_52], %64 {strides = array<i32>} : memref<1x32xf32, #tpu.memory_space<vmem>>, vector<1x32xf32>,
    } else {
    }
    return
  }
  func.func @transform_0(%arg0: i32, %arg1: i32) -> (i32, i32) {
    %c0_i32 = arith.constant 0 : i32
    return %arg1, %arg0 : i32, i32
  }
  func.func @transform_1(%arg0: i32, %arg1: i32) -> (i32, i32) {
    %c0_i32 = arith.constant 0 : i32
    return %arg1, %arg0 : i32, i32
  }
  func.func @transform_2(%arg0: i32, %arg1: i32) -> (i32, i32) {
    %c0_i32 = arith.constant 0 : i32
    %c0_i32_0 = arith.constant 0 : i32
    return %c0_i32, %arg0 : i32, i32
  }
  func.func @transform_3(%arg0: i32, %arg1: i32) -> (i32, i32) {
    %c0_i32 = arith.constant 0 : i32
    %c0_i32_0 = arith.constant 0 : i32
    return %c0_i32, %arg0 : i32, i32
  }
  func.func @transform_4(%arg0: i32, %arg1: i32) -> (i32, i32) {
    %c0_i32 = arith.constant 0 : i32
    %c0_i32_0 = arith.constant 0 : i32
    return %c0_i32, %arg0 : i32, i32
  }
  func.func @transform_5(%arg0: i32, %arg1: i32) -> (i32, i32) {
    %c0_i32 = arith.constant 0 : i32
    %c0_i32_0 = arith.constant 0 : i32
    return %c0_i32, %arg0 : i32, i32
  }
}

</mosaic_0001>

<llo_original>
// kernel: tpu_custom_call.1
$region0: #{tpu_custom_call.1}
  #allocation0 [shape = 'u32[]', space=smem, size = 0x4, offset = 0x4, fixed_abs, tag = 'smem constant byte address 0x4 - core index']
  #allocation1 [shape = 'u32[144,128]{1,0:T(1,128)}', space=vmem, size = 0x12000, scoped, tag = 'internal scratch']
  #allocation2 [shape = 'f32[8,32]{1,0:T(8,128)}', space=vmem, size = 0x1000, scoped, tag = 'scratch operand']
  #allocation3 [shape = 'f32[8,32]{1,0:T(8,128)}', space=vmem, size = 0x1000, scoped, tag = 'scratch operand']
  #allocation4 [shape = 'f32[8,32]{1,0:T(8,128)}', space=vmem, size = 0x1000, scoped, tag = 'scratch operand']
  #allocation5 [shape = 'f32[8,32]{1,0:T(8,128)}', space=vmem, size = 0x1000, scoped, tag = 'scratch operand']
  %s0 = inlined_call_operand.hbm [shape: f32[8,32], index: 0, kind: input, shape index: {}]
  %s1 = inlined_call_operand.hbm [shape: f32[8,32], index: 1, kind: input, shape index: {}]
  %s2 = inlined_call_operand.hbm [shape: f32[1,32], index: 2, kind: output, shape index: {0}]
  %s3 = inlined_call_operand.hbm [shape: f32[1,32], index: 3, kind: output, shape index: {1}]
  %s4 = inlined_call_operand.hbm [shape: f32[1,32], index: 4, kind: output, shape index: {2}]
  %s5 = inlined_call_operand.hbm [shape: f32[1,32], index: 5, kind: output, shape index: {3}]
  %6 = xla_tuple %s2, %s3, %s4, %s5
  %s7 = sld [smem:[#allocation0]]
  $region58: #{tpu_custom_call.1} parent=0
    _
  %s9 = ssub.s32 1, %s7
  %s10 = scalar_select 0, %s9, %s7
  $region1: #{tpu_custom_call.1} parent=0
    #allocation6 [shape = 'u8[4096]{0}', space=vmem, size = 0x1000, scoped, tag = 'input window, operand 0, single buffered']
    #allocation7 [shape = 's32[1]{0}', space=sflag, size = 0x4, scoped, tag = 'scoped memory for tpu_custom_call.1']
    #allocation8 [shape = 's32[1]{0}', space=sflag, size = 0x4, scoped, tag = 'scoped memory for tpu_custom_call.1']
    #allocation9 [shape = 'u8[4096]{0}', space=vmem, size = 0x1000, scoped, tag = 'input window, operand 1, single buffered']
    #allocation10 [shape = 's32[1]{0}', space=sflag, size = 0x4, scoped, tag = 'scoped memory for tpu_custom_call.1']
    #allocation11 [shape = 'u8[512]{0}', space=vmem, size = 0x400, scoped, tag = 'output window, operand 0, single buffered']
    #allocation12 [shape = 'u8[512]{0}', space=vmem, size = 0x400, scoped, tag = 'output window, operand 1, single buffered']
    #allocation13 [shape = 's32[1]{0}', space=sflag, size = 0x4, scoped, tag = 'scoped memory for tpu_custom_call.1']
    #allocation14 [shape = 'u8[512]{0}', space=vmem, size = 0x400, scoped, tag = 'output window, operand 2, single buffered']
    #allocation15 [shape = 'u8[512]{0}', space=vmem, size = 0x400, scoped, tag = 'output window, operand 3, single buffered']
    #allocation16 [shape = 's32[1]{0}', space=sflag, size = 0x4, scoped, tag = 'scoped memory for tpu_custom_call.1']
    %11 = vsyncpa [#allocation7], 0
    %12 = vsyncpa [#allocation10], 0
    %13 = vsyncpa [#allocation8], 0
    %14 = vsyncpa [#allocation13], 0
    %15 = vsyncpa [#allocation16], 0
    // Predicated region
    $region2: #{tpu_custom_call.1} parent=1 // pred_check
      _
    $region3: #{tpu_custom_call.1} parent=1 // pred_check_branch
      %17 = sbr.rel (0) target = $region5
    $region4: #{tpu_custom_call.1} parent=1 // pred_region
      %s19 = ssub.s32 128, 128
      %20 = vsyncadd [#allocation7], %s19
      %s22 = sshll.u32 [#allocation6], 4
      %s23 = int_to_ptr.vmem [resolvable:$true] %s22
      %25 = dma.hbm_to_vmem [thread:$0]  %s0, 128, %s23, [#allocation7]
    $region5: #{tpu_custom_call.1} parent=1 // pred_fallthru
      _
    // Predicated region
    $region6: #{tpu_custom_call.1} parent=1 // pred_check
      _
    $region7: #{tpu_custom_call.1} parent=1 // pred_check_branch
      %27 = sbr.rel (0) target = $region9
    $region8: #{tpu_custom_call.1} parent=1 // pred_region
      %s29 = ssub.s32 128, 128
      %30 = vsyncadd [#allocation10], %s29
      %s32 = sshll.u32 [#allocation9], 4
      %s33 = int_to_ptr.vmem [resolvable:$true] %s32
      %35 = dma.hbm_to_vmem [thread:$0]  %s1, 128, %s33, [#allocation10]
    $region9: #{tpu_custom_call.1} parent=1 // pred_fallthru
      _
    // Predicated region
    $region10: #{tpu_custom_call.1} parent=1 // pred_check
      _
    $region11: #{tpu_custom_call.1} parent=1 // pred_check_branch
      %37 = sbr.rel (0) target = $region13
    $region12: #{tpu_custom_call.1} parent=1 // pred_region
      %38 = dma.done [#allocation7], 128
    $region13: #{tpu_custom_call.1} parent=1 // pred_fallthru
      _
    // Predicated region
    $region14: #{tpu_custom_call.1} parent=1 // pred_check
      _
    $region15: #{tpu_custom_call.1} parent=1 // pred_check_branch
      %40 = sbr.rel (0) target = $region17
    $region16: #{tpu_custom_call.1} parent=1 // pred_region
      %41 = dma.done [#allocation10], 128
    $region17: #{tpu_custom_call.1} parent=1 // pred_fallthru
      _
    %p42 = scmp.eq.s32.totalorder 0, 0
    // Predicated region
    $region18: #{tpu_custom_call.1} parent=1 // pred_check
      %p43 = pneg %p42
    $region19: #{tpu_custom_call.1} parent=1 // pred_check_branch
      %45 = sbr.rel (%p43) target = $region21
    $region20: #{tpu_custom_call.1} parent=1 // pred_region
      %vm46 = vcmask 261120
      %47 = vst.msk [vmem:[#allocation2] sm:$0xff] %vm46, 0.0
      %48 = vst.msk [vmem:[#allocation3] sm:$0xff] %vm46, 0.0
      %49 = vst.msk [vmem:[#allocation4] sm:$0xff] %vm46, 0.0
      %50 = vst.msk [vmem:[#allocation5] sm:$0xff] %vm46, 0.0
    $region21: #{tpu_custom_call.1} parent=1 // pred_fallthru
      _
    %v51 = vld [vmem:[#allocation6] sm:$0xff]
    %v52 = vld [vmem:[#allocation2] sm:$0xff]
    %v53 = vadd.f32 %v51, 0.0
    %v54 = vadd.f32 %v52, %v53
    %vm55 = vcmask 261120
    %56 = vst.msk [vmem:[#allocation2] sm:$0xff] %vm55, %v54
    %v57 = vld [vmem:[#allocation3] sm:$0xff]
    %v58 = vmul.f32 %v51, %v51
    %v59 = vadd.f32 %v58, 0.0
    %v60 = vadd.f32 %v57, %v59
    %61 = vst.msk [vmem:[#allocation3] sm:$0xff] %vm55, %v60
    %v62 = vld [vmem:[#allocation9] sm:$0xff]
    %v63 = vld [vmem:[#allocation4] sm:$0xff]
    %v64 = vadd.f32 %v62, 0.0
    %v65 = vadd.f32 %v63, %v64
    %66 = vst.msk [vmem:[#allocation4] sm:$0xff] %vm55, %v65
    %v67 = vld [vmem:[#allocation5] sm:$0xff]
    %v68 = vmul.f32 %v62, %v62
    %v69 = vadd.f32 %v68, 0.0
    %v70 = vadd.f32 %v67, %v69
    %71 = vst.msk [vmem:[#allocation5] sm:$0xff] %vm55, %v70
    // Predicated region
    $region22: #{tpu_custom_call.1} parent=1 // pred_check
      %p72 = pneg %p42
    $region23: #{tpu_custom_call.1} parent=1 // pred_check_branch
      %74 = sbr.rel (%p72) target = $region25
    $region24: #{tpu_custom_call.1} parent=1 // pred_region
      %v75 = vld [vmem:[#allocation2] sm:$0xff]
      %v76 = vsel %vm55, %v75, 0.0
      %v77 = vrot.slane %v76, 4
      %v78 = vadd.f32 %v76, %v77
      %v79 = vrot.slane %v78, 2
      %v80 = vadd.f32 %v78, %v79
      %v81 = vrot.slane %v80, 1
      %v82 = vadd.f32 %v80, %v81
      %v83 = vld [vmem:[#allocation3] sm:$0xff]
      %v84 = vsel %vm55, %v83, 0.0
      %v85 = vrot.slane %v84, 4
      %v86 = vadd.f32 %v84, %v85
      %v87 = vrot.slane %v86, 2
      %v88 = vadd.f32 %v86, %v87
      %v89 = vrot.slane %v88, 1
      %v90 = vadd.f32 %v88, %v89
      %v91 = vmul.f32 %v82, 0.125
      %v92 = vmul.f32 %v82, %v91
      %v93 = vsub.f32 %v90, %v92
      %v94 = vmul.f32 %v93, 0.14285715
      %v95 = vmax.f32 %v94, 0.0
      %vm96 = vcmask 253952
      %97 = vst.msk [vmem:[#allocation11] sm:$0x1] %vm96, %v91
      %v98 = vmul.f32 %v95, 8.0
      %v99 = vrsqrt.pop %v98
      %100 = vst.msk [vmem:[#allocation12] sm:$0x1] %vm96, %v99
      %v101 = vld [vmem:[#allocation4] sm:$0xff]
      %v102 = vsel %vm55, %v101, 0.0
      %v103 = vrot.slane %v102, 4
      %v104 = vadd.f32 %v102, %v103
      %v105 = vrot.slane %v104, 2
      %v106 = vadd.f32 %v104, %v105
      %v107 = vrot.slane %v106, 1
      %v108 = vadd.f32 %v106, %v107
      %v109 = vld [vmem:[#allocation5] sm:$0xff]
      %v110 = vsel %vm55, %v109, 0.0
      %v111 = vrot.slane %v110, 4
      %v112 = vadd.f32 %v110, %v111
      %v113 = vrot.slane %v112, 2
      %v114 = vadd.f32 %v112, %v113
      %v115 = vrot.slane %v114, 1
      %v116 = vadd.f32 %v114, %v115
      %v117 = vmul.f32 %v108, 0.125
      %v118 = vmul.f32 %v108, %v117
      %v119 = vsub.f32 %v116, %v118
      %v120 = vmul.f32 %v119, 0.14285715
      %v121 = vmax.f32 %v120, 0.0
      %122 = vst.msk [vmem:[#allocation14] sm:$0x1] %vm96, %v117
      %v123 = vmul.f32 %v121, 8.0
      %v124 = vrsqrt.pop %v123
      %125 = vst.msk [vmem:[#allocation15] sm:$0x1] %vm96, %v124
    $region25: #{tpu_custom_call.1} parent=1 // pred_fallthru
      _
    // Predicated region
    $region26: #{tpu_custom_call.1} parent=1 // pred_check
      _
    $region27: #{tpu_custom_call.1} parent=1 // pred_check_branch
      %127 = sbr.rel (0) target = $region29
    $region28: #{tpu_custom_call.1} parent=1 // pred_region
      %s129 = ssub.s32 16, 16
      %130 = vsyncadd [#allocation8], %s129
      %s132 = sshll.u32 [#allocation11], 4
      %s133 = int_to_ptr.vmem [resolvable:$true] %s132
      %135 = dma.vmem_to_hbm [thread:$0]  %s133, 16, %s2, [#allocation8]
    $region29: #{tpu_custom_call.1} parent=1 // pred_fallthru
      _
    // Predicated region
    $region30: #{tpu_custom_call.1} parent=1 // pred_check
      _
    $region31: #{tpu_custom_call.1} parent=1 // pred_check_branch
      %137 = sbr.rel (0) target = $region33
    $region32: #{tpu_custom_call.1} parent=1 // pred_region
      %s139 = ssub.s32 16, 16
      %140 = vsyncadd [#allocation13], %s139
      %s142 = sshll.u32 [#allocation12], 4
      %s143 = int_to_ptr.vmem [resolvable:$true] %s142
      %145 = dma.vmem_to_hbm [thread:$0]  %s143, 16, %s3, [#allocation13]
    $region33: #{tpu_custom_call.1} parent=1 // pred_fallthru
      _
    // Predicated region
    $region34: #{tpu_custom_call.1} parent=1 // pred_check
      _
    $region35: #{tpu_custom_call.1} parent=1 // pred_check_branch
      %147 = sbr.rel (0) target = $region37
    $region36: #{tpu_custom_call.1} parent=1 // pred_region
      %s149 = ssub.s32 16, 16
      %150 = vsyncadd [#allocation13], %s149
      %s152 = sshll.u32 [#allocation14], 4
      %s153 = int_to_ptr.vmem [resolvable:$true] %s152
      %155 = dma.vmem_to_hbm [thread:$0]  %s153, 16, %s4, [#allocation13]
    $region37: #{tpu_custom_call.1} parent=1 // pred_fallthru
      _
    // Predicated region
    $region38: #{tpu_custom_call.1} parent=1 // pred_check
      _
    $region39: #{tpu_custom_call.1} parent=1 // pred_check_branch
      %157 = sbr.rel (0) target = $region41
    $region40: #{tpu_custom_call.1} parent=1 // pred_region
      %s159 = ssub.s32 16, 16
      %160 = vsyncadd [#allocation16], %s159
      %s162 = sshll.u32 [#allocation15], 4
      %s163 = int_to_ptr.vmem [resolvable:$true] %s162
      %165 = dma.vmem_to_hbm [thread:$0]  %s163, 16, %s5, [#allocation16]
    $region41: #{tpu_custom_call.1} parent=1 // pred_fallthru
      _
    // Predicated region
    $region42: #{tpu_custom_call.1} parent=1 // pred_check
      _
    $region43: #{tpu_custom_call.1} parent=1 // pred_check_branch
      %167 = sbr.rel (0) target = $region45
    $region44: #{tpu_custom_call.1} parent=1 // pred_region
      %168 = dma.done [#allocation8], 16
    $region45: #{tpu_custom_call.1} parent=1 // pred_fallthru
      _
    // Predicated region
    $region46: #{tpu_custom_call.1} parent=1 // pred_check
      _
    $region47: #{tpu_custom_call.1} parent=1 // pred_check_branch
      %170 = sbr.rel (0) target = $region49
    $region48: #{tpu_custom_call.1} parent=1 // pred_region
      %171 = dma.done [#allocation13], 16
    $region49: #{tpu_custom_call.1} parent=1 // pred_fallthru
      _
    // Predicated region
    $region50: #{tpu_custom_call.1} parent=1 // pred_check
      _
    $region51: #{tpu_custom_call.1} parent=1 // pred_check_branch
      %173 = sbr.rel (0) target = $region53
    $region52: #{tpu_custom_call.1} parent=1 // pred_region
      %174 = dma.done [#allocation13], 16
    $region53: #{tpu_custom_call.1} parent=1 // pred_fallthru
      _
    // Predicated region
    $region54: #{tpu_custom_call.1} parent=1 // pred_check
      _
    $region55: #{tpu_custom_call.1} parent=1 // pred_check_branch
      %176 = sbr.rel (0) target = $region57
    $region56: #{tpu_custom_call.1} parent=1 // pred_region
      %177 = dma.done [#allocation16], 16
    $region57: #{tpu_custom_call.1} parent=1 // pred_fallthru
      _
    %178 = vsyncpa [#allocation7], 1
    %179 = vsyncpa [#allocation10], 1
    %180 = vsyncpa [#allocation8], 1
    %181 = vsyncpa [#allocation13], 1
    %182 = vsyncpa [#allocation16], 1

</llo_original>
